<compile_context>
chip_gen: v6e
topology: v6e:2x2x1
jax: 0.10.0
libtpu: 0.0.40
codegen_flags: <defaults>
</compile_context>

<pallas_src>
import functools

import jax
import jax.numpy as jnp
from jax.experimental import pallas as pl
from jax.experimental.pallas import tpu as pltpu

_LANES = 128
_MAX_BLOCK_ROWS = 2048        # 2048 x 128 f32 = 1 MiB per input per grid step


def _bce_elem(x, y):
    # Numerically stable BCE-with-logits (matches PyTorch):
    #   max(x, 0) - x*y + log1p(exp(-|x|))
    return jnp.maximum(x, 0.0) - x * y + jnp.log1p(jnp.exp(-jnp.abs(x)))


def _bce_kernel(x_ref, y_ref, o_ref, acc_ref, *, num_blocks, block_rows,
                rows_in_last_block, inv_n):
    i = pl.program_id(0)

    @pl.when(i == 0)
    def _():
        acc_ref[...] = jnp.zeros_like(acc_ref)
        o_ref[...] = jnp.zeros_like(o_ref)

    x = x_ref[...].astype(jnp.float32)
    y = y_ref[...].astype(jnp.float32)
    loss = _bce_elem(x, y)

    if rows_in_last_block == block_rows:
        # Statically known: every block is full -> no mask code is compiled.
        acc_ref[...] += loss
    else:
        # Only the single ragged last block pays for the (block-local) mask.
        @pl.when(i != num_blocks - 1)
        def _():
            acc_ref[...] += loss

        @pl.when(i == num_blocks - 1)
        def _():
            row_ids = jax.lax.broadcasted_iota(jnp.int32, loss.shape, 0)
            acc_ref[...] += jnp.where(row_ids < rows_in_last_block, loss, 0.0)

    @pl.when(i == num_blocks - 1)
    def _():
        # One cross-sublane reduce (XLU) + fold the 1/N scale; writes a tiny
        # (1, 128) f32 block instead of the whole accumulator.
        o_ref[...] = jnp.sum(acc_ref[...], axis=0, keepdims=True) * inv_n


def adversarial_loss(y_pred, y_true):
    """BCEWithLogitsLoss with 'mean' reduction over all elements."""
    assert y_pred.shape == y_true.shape
    n_elems = int(y_pred.size)
    assert n_elems > 0
    inv_n = 1.0 / n_elems

    x_flat = jnp.ravel(y_pred)
    y_flat = jnp.ravel(y_true)

    rows_full = n_elems // _LANES            # complete 128-lane rows
    rem = n_elems - rows_full * _LANES       # <128 lane-ragged tail elements

    total = jnp.float32(0.0)

    if rows_full > 0:
        main_elems = rows_full * _LANES
        if rem:
            # Lane-ragged size: the kernel streams the 128-aligned prefix; the
            # <128-element tail is added below with a trivial XLA reduce.
            # (The prefix slice is the only copy; the common aligned case is
            # fully zero-copy.)
            x_main = jax.lax.slice(x_flat, (0,), (main_elems,))
            y_main = jax.lax.slice(y_flat, (0,), (main_elems,))
        else:
            x_main = x_flat
            y_main = y_flat

        # Free reshape (bitcast) to a lane-dense 2-D slab.
        x2 = x_main.reshape(rows_full, _LANES)
        y2 = y_main.reshape(rows_full, _LANES)

        if rows_full <= _MAX_BLOCK_ROWS:
            block_rows = rows_full           # block == full array (always legal)
        else:
            block_rows = _MAX_BLOCK_ROWS     # multiple of 8 (and of 32)
        num_blocks = pl.cdiv(rows_full, block_rows)
        rows_in_last_block = rows_full - (num_blocks - 1) * block_rows

        kernel = functools.partial(
            _bce_kernel,
            num_blocks=num_blocks,
            block_rows=block_rows,
            rows_in_last_block=rows_in_last_block,
            inv_n=inv_n,
        )

        in_spec = pl.BlockSpec((block_rows, _LANES), lambda i: (i, 0))
        out_spec = pl.BlockSpec((1, _LANES), lambda i: (0, 0))

        partial = pl.pallas_call(
            kernel,
            out_shape=jax.ShapeDtypeStruct((1, _LANES), jnp.float32),
            grid_spec=pltpu.PrefetchScalarGridSpec(
                num_scalar_prefetch=0,
                grid=(num_blocks,),
                in_specs=[in_spec, in_spec],
                out_specs=out_spec,
                scratch_shapes=[pltpu.VMEM((block_rows, _LANES), jnp.float32)],
            ),
            compiler_params=pltpu.CompilerParams(
                dimension_semantics=("arbitrary",),
                vmem_limit_bytes=32 * 1024 * 1024,
            ),
        )(x2, y2)

        total = total + jnp.sum(partial)

    if rem:
        xt = jax.lax.slice(x_flat, (rows_full * _LANES,), (n_elems,))
        yt = jax.lax.slice(y_flat, (rows_full * _LANES,), (n_elems,))
        tail = _bce_elem(xt.astype(jnp.float32), yt.astype(jnp.float32))
        total = total + jnp.sum(tail) * inv_n

    return total


if __name__ == "__main__":
    key = jax.random.PRNGKey(0)
    k1, k2 = jax.random.split(key)

    # Discriminator-style logits / targets: batch=2, channels=4, spatial=16x16.
    y_pred = jax.random.normal(k1, (2, 4, 16, 16), dtype=jnp.float32)
    y_true = (jax.random.uniform(k2, (2, 4, 16, 16)) > 0.5).astype(jnp.float32)

    loss = adversarial_loss(y_pred, y_true)
    loss = jax.block_until_ready(loss)

    # Reference check in plain JAX (same stable formulation).
    x = y_pred.astype(jnp.float32)
    y = y_true.astype(jnp.float32)
    ref = jnp.mean(jnp.maximum(x, 0.0) - x * y + jnp.log1p(jnp.exp(-jnp.abs(x))))
    assert jnp.allclose(loss, ref, rtol=1e-5, atol=1e-6), (loss, ref)

    print("KERNEL_OK")
</pallas_src>

<mosaic_0001>
module attributes {stable_mosaic.version = 11 : i64} {
  func.func @_bce_kernel(%arg0: i32, %arg1: memref<16x128xf32, #tpu.memory_space<vmem>>, %arg2: memref<16x128xf32, #tpu.memory_space<vmem>>, %arg3: memref<1x128xf32, #tpu.memory_space<vmem>>, %arg4: memref<16x128xf32, #tpu.memory_space<vmem>>) attributes {dimension_semantics = [#tpu.dimension_semantics<arbitrary>], iteration_bounds = array<i64: 1>, scalar_prefetch = 0 : i64, scratch_operands = 1 : i64, tpu.core_type = #tpu.core_type<tc>, window_params = [{transform_indices = @transform_0, window_bounds = array<i64: 16, 128>}, {transform_indices = @transform_1, window_bounds = array<i64: 16, 128>}, {pipeline_mode = #tpu.pipeline_mode<synchronous>, transform_indices = @transform_2, window_bounds = array<i64: 1, 128>}]} {
    %c0_i32 = arith.constant 0 : i32
    %0 = arith.cmpi eq, %arg0, %c0_i32 : i32
    %1 = arith.extui %0 : i1 to i32
    %c0_i32_0 = arith.constant 0 : i32
    %2 = arith.cmpi ne, %1, %c0_i32_0 : i32
    scf.if %2 {
      %cst_11 = arith.constant 0.000000e+00 : f32
      %21 = vector.broadcast %cst_11 : f32 to vector<16x128xf32>
      %c0_12 = arith.constant 0 : index
      %c0_13 = arith.constant 0 : index
      %22 = vector.load %arg4[%c0_12, %c0_13] : memref<16x128xf32, #tpu.memory_space<vmem>>, vector<16x128xf32>
      tpu.vector_store %arg4[%c0_12, %c0_13], %21 {strides = array<i32>} : memref<16x128xf32, #tpu.memory_space<vmem>>, vector<16x128xf32>,
      %cst_14 = arith.constant 0.000000e+00 : f32
      %23 = vector.broadcast %cst_14 : f32 to vector<1x128xf32>
      %c0_15 = arith.constant 0 : index
      %c0_16 = arith.constant 0 : index
      %24 = vector.load %arg3[%c0_15, %c0_16] : memref<1x128xf32, #tpu.memory_space<vmem>>, vector<1x128xf32>
      tpu.vector_store %arg3[%c0_15, %c0_16], %23 {strides = array<i32>} : memref<1x128xf32, #tpu.memory_space<vmem>>, vector<1x128xf32>,
    } else {
    }
    %c0 = arith.constant 0 : index
    %c0_1 = arith.constant 0 : index
    %3 = vector.load %arg1[%c0, %c0_1] : memref<16x128xf32, #tpu.memory_space<vmem>>, vector<16x128xf32>
    %c0_2 = arith.constant 0 : index
    %c0_3 = arith.constant 0 : index
    %4 = vector.load %arg2[%c0_2, %c0_3] : memref<16x128xf32, #tpu.memory_space<vmem>>, vector<16x128xf32>
    %cst = arith.constant 0.000000e+00 : f32
    %5 = vector.broadcast %cst : f32 to vector<16x128xf32>
    %6 = arith.maximumf %3, %5 : vector<16x128xf32>
    %7 = arith.mulf %3, %4 : vector<16x128xf32>
    %8 = arith.subf %6, %7 : vector<16x128xf32>
    %9 = math.absf %3 : vector<16x128xf32>
    %cst_4 = arith.constant 0.000000e+00 : f32
    %10 = vector.broadcast %cst_4 : f32 to vector<16x128xf32>
    %11 = arith.subf %10, %9 : vector<16x128xf32>
    %12 = math.exp %11 : vector<16x128xf32>
    %13 = math.log1p %12 : vector<16x128xf32>
    %14 = arith.addf %8, %13 : vector<16x128xf32>
    %c0_5 = arith.constant 0 : index
    %c0_6 = arith.constant 0 : index
    %15 = vector.load %arg4[%c0_5, %c0_6] : memref<16x128xf32, #tpu.memory_space<vmem>>, vector<16x128xf32>
    %16 = arith.addf %15, %14 : vector<16x128xf32>
    %c0_7 = arith.constant 0 : index
    %c0_8 = arith.constant 0 : index
    %17 = vector.load %arg4[%c0_7, %c0_8] : memref<16x128xf32, #tpu.memory_space<vmem>>, vector<16x128xf32>
    tpu.vector_store %arg4[%c0_7, %c0_8], %16 {strides = array<i32>} : memref<16x128xf32, #tpu.memory_space<vmem>>, vector<16x128xf32>,
    %c0_i32_9 = arith.constant 0 : i32
    %18 = arith.cmpi eq, %arg0, %c0_i32_9 : i32
    %19 = arith.extui %18 : i1 to i32
    %c0_i32_10 = arith.constant 0 : i32
    %20 = arith.cmpi ne, %19, %c0_i32_10 : i32
    scf.if %20 {
      %c0_11 = arith.constant 0 : index
      %c0_12 = arith.constant 0 : index
      %21 = vector.load %arg4[%c0_11, %c0_12] : memref<16x128xf32, #tpu.memory_space<vmem>>, vector<16x128xf32>
      %cst_13 = arith.constant dense<0.000000e+00> : vector<128xf32>
      %22 = vector.multi_reduction <add>, %21, %cst_13 [0] : vector<16x128xf32> to vector<128xf32>
      %23 = vector.shape_cast %22 : vector<128xf32> to vector<1x128xf32>
      %cst_14 = arith.constant 4.8828125E-4 : f32
      %24 = vector.broadcast %cst_14 : f32 to vector<1x128xf32>
      %25 = arith.mulf %23, %24 : vector<1x128xf32>
      %c0_15 = arith.constant 0 : index
      %c0_16 = arith.constant 0 : index
      %26 = vector.load %arg3[%c0_15, %c0_16] : memref<1x128xf32, #tpu.memory_space<vmem>>, vector<1x128xf32>
      tpu.vector_store %arg3[%c0_15, %c0_16], %25 {strides = array<i32>} : memref<1x128xf32, #tpu.memory_space<vmem>>, vector<1x128xf32>,
    } else {
    }
    return
  }
  func.func @transform_0(%arg0: i32) -> (i32, i32) {
    %c0_i32 = arith.constant 0 : i32
    %c0_i32_0 = arith.constant 0 : i32
    return %arg0, %c0_i32 : i32, i32
  }
  func.func @transform_1(%arg0: i32) -> (i32, i32) {
    %c0_i32 = arith.constant 0 : i32
    %c0_i32_0 = arith.constant 0 : i32
    return %arg0, %c0_i32 : i32, i32
  }
  func.func @transform_2(%arg0: i32) -> (i32, i32) {
    %c0_i32 = arith.constant 0 : i32
    %c0_i32_0 = arith.constant 0 : i32
    %c0_i32_1 = arith.constant 0 : i32
    return %c0_i32, %c0_i32_0 : i32, i32
  }
}

</mosaic_0001>

<llo_original>
// kernel: tpu_custom_call.1
$region0: #{tpu_custom_call.1}
  #allocation0 [shape = 'u32[]', space=smem, size = 0x4, offset = 0x4, fixed_abs, tag = 'smem constant byte address 0x4 - core index']
  #allocation1 [shape = 'u32[144,128]{1,0:T(1,128)}', space=vmem, size = 0x12000, scoped, tag = 'internal scratch']
  #allocation2 [shape = 'f32[16,128]{1,0:T(8,128)}', space=vmem, size = 0x2000, scoped, tag = 'scratch operand']
  %s0 = inlined_call_operand.hbm [shape: f32[16,128], index: 0, kind: input, shape index: {}]
  %s1 = inlined_call_operand.hbm [shape: f32[16,128], index: 1, kind: input, shape index: {}]
  %s2 = inlined_call_operand.hbm [shape: f32[1,128], index: 2, kind: output, shape index: {}]
  %s3 = sld [smem:[#allocation0]]
  $region34: #{tpu_custom_call.1} parent=0
    _
  %s5 = ssub.s32 1, %s3
  %s6 = scalar_select 0, %s5, %s3
  $region1: #{tpu_custom_call.1} parent=0
    #allocation3 [shape = 'u8[8192]{0}', space=vmem, size = 0x2000, scoped, tag = 'input window, operand 0, single buffered']
    #allocation4 [shape = 's32[1]{0}', space=sflag, size = 0x4, scoped, tag = 'scoped memory for tpu_custom_call.1']
    #allocation5 [shape = 's32[1]{0}', space=sflag, size = 0x4, scoped, tag = 'scoped memory for tpu_custom_call.1']
    #allocation6 [shape = 'u8[8192]{0}', space=vmem, size = 0x2000, scoped, tag = 'input window, operand 1, single buffered']
    #allocation7 [shape = 's32[1]{0}', space=sflag, size = 0x4, scoped, tag = 'scoped memory for tpu_custom_call.1']
    #allocation8 [shape = 'u8[512]{0}', space=vmem, size = 0x400, scoped, tag = 'output window, operand 0, single buffered']
    %7 = vsyncpa [#allocation4], 0
    %8 = vsyncpa [#allocation7], 0
    %9 = vsyncpa [#allocation5], 0
    // Predicated region
    $region2: #{tpu_custom_call.1} parent=1 // pred_check
      _
    $region3: #{tpu_custom_call.1} parent=1 // pred_check_branch
      %11 = sbr.rel (0) target = $region5
    $region4: #{tpu_custom_call.1} parent=1 // pred_region
      %s13 = ssub.s32 256, 256
      %14 = vsyncadd [#allocation4], %s13
      %s15 = sshll.u32 [#allocation3], 4
      %s16 = int_to_ptr.vmem [resolvable:$true] %s15
      %21 = dma.hbm_to_vmem [thread:$0]  %s0, 256, %s16, [#allocation4], 128, 128, 8
    $region5: #{tpu_custom_call.1} parent=1 // pred_fallthru
      _
    // Predicated region
    $region6: #{tpu_custom_call.1} parent=1 // pred_check
      _
    $region7: #{tpu_custom_call.1} parent=1 // pred_check_branch
      %23 = sbr.rel (0) target = $region9
    $region8: #{tpu_custom_call.1} parent=1 // pred_region
      %s25 = ssub.s32 256, 256
      %26 = vsyncadd [#allocation7], %s25
      %s27 = sshll.u32 [#allocation6], 4
      %s28 = int_to_ptr.vmem [resolvable:$true] %s27
      %33 = dma.hbm_to_vmem [thread:$0]  %s1, 256, %s28, [#allocation7], 128, 128, 8
    $region9: #{tpu_custom_call.1} parent=1 // pred_fallthru
      _
    // Predicated region
    $region10: #{tpu_custom_call.1} parent=1 // pred_check
      _
    $region11: #{tpu_custom_call.1} parent=1 // pred_check_branch
      %35 = sbr.rel (0) target = $region13
    $region12: #{tpu_custom_call.1} parent=1 // pred_region
      %36 = dma.done [#allocation4], 256
    $region13: #{tpu_custom_call.1} parent=1 // pred_fallthru
      _
    // Predicated region
    $region14: #{tpu_custom_call.1} parent=1 // pred_check
      _
    $region15: #{tpu_custom_call.1} parent=1 // pred_check_branch
      %38 = sbr.rel (0) target = $region17
    $region16: #{tpu_custom_call.1} parent=1 // pred_region
      %39 = dma.done [#allocation7], 256
    $region17: #{tpu_custom_call.1} parent=1 // pred_fallthru
      _
    %p40 = scmp.eq.s32.totalorder 0, 0
    // Predicated region
    $region18: #{tpu_custom_call.1} parent=1 // pred_check
      %p41 = pneg %p40
    $region19: #{tpu_custom_call.1} parent=1 // pred_check_branch
      %43 = sbr.rel (%p41) target = $region21
    $region20: #{tpu_custom_call.1} parent=1 // pred_region
      %44 = vst [vmem:[#allocation2] sm:$0xff] 0.0
      %45 = vst [vmem:[#allocation2 + $0x8] sm:$0xff] 0.0
      %46 = vst [vmem:[#allocation8] sm:$0x1] 0.0
    $region21: #{tpu_custom_call.1} parent=1 // pred_fallthru
      _
    %v47 = vld [vmem:[#allocation3] sm:$0xff]
    %v48 = vld [vmem:[#allocation3 + $0x8] sm:$0xff]
    %v49 = vld [vmem:[#allocation6] sm:$0xff]
    %v50 = vld [vmem:[#allocation6 + $0x8] sm:$0xff]
    %v51 = vmax.f32 %v47, 0.0
    %v52 = vmax.f32 %v48, 0.0
    %v53 = vmul.f32 %v47, %v49
    %v54 = vmul.f32 %v48, %v50
    %v55 = vsub.f32 %v51, %v53
    %v56 = vsub.f32 %v52, %v54
    %v57 = vand.u32 2147483647, %v47
    %v58 = vand.u32 2147483647, %v48
    %v59 = vsub.f32 0.0, %v57
    %v60 = vsub.f32 0.0, %v58
    %v61 = vmul.f32 %v59, 1.442695
    %v62 = vpow.pop %v61
    %v63 = vmul.f32 %v60, 1.442695
    %v64 = vpow.pop %v63
    %v65 = vadd.f32 %v62, 1.0
    %v66 = vlog2.pop %v65
    %v67 = vmul.f32 %v66, 0.6931472
    %v68 = vmul.f32 -0.5, %v62
    %v69 = vadd.f32 %v68, 1.0
    %v70 = vmul.f32 %v69, %v62
    %v71 = vand.u32 2147483647, %v62
    %vm72 = vcmp.lt.f32.partialorder %v71, 0.0004427343
    %v73 = vsel %vm72, %v70, %v67
    %v74 = vadd.f32 %v64, 1.0
    %v75 = vlog2.pop %v74
    %v76 = vmul.f32 %v75, 0.6931472
    %v77 = vmul.f32 -0.5, %v64
    %v78 = vadd.f32 %v77, 1.0
    %v79 = vmul.f32 %v78, %v64
    %v80 = vand.u32 2147483647, %v64
    %vm81 = vcmp.lt.f32.partialorder %v80, 0.0004427343
    %v82 = vsel %vm81, %v79, %v76
    %v83 = vadd.f32 %v55, %v73
    %v84 = vadd.f32 %v56, %v82
    %v85 = vld [vmem:[#allocation2] sm:$0xff]
    %v86 = vld [vmem:[#allocation2 + $0x8] sm:$0xff]
    %v87 = vadd.f32 %v85, %v83
    %v88 = vadd.f32 %v86, %v84
    %89 = vst [vmem:[#allocation2] sm:$0xff] %v87
    %90 = vst [vmem:[#allocation2 + $0x8] sm:$0xff] %v88
    // Predicated region
    $region22: #{tpu_custom_call.1} parent=1 // pred_check
      %p91 = pneg %p40
    $region23: #{tpu_custom_call.1} parent=1 // pred_check_branch
      %93 = sbr.rel (%p91) target = $region25
    $region24: #{tpu_custom_call.1} parent=1 // pred_region
      %v94 = vld [vmem:[#allocation2] sm:$0xff]
      %v95 = vld [vmem:[#allocation2 + $0x8] sm:$0xff]
      %v96 = vadd.f32 %v94, %v95
      %v97 = vrot.slane %v96, 4
      %v98 = vadd.f32 %v96, %v97
      %v99 = vrot.slane %v98, 2
      %v100 = vadd.f32 %v98, %v99
      %v101 = vrot.slane %v100, 1
      %v102 = vadd.f32 %v100, %v101
      %v103 = vmul.f32 %v102, 0.00048828125
      %104 = vst [vmem:[#allocation8] sm:$0x1] %v103
    $region25: #{tpu_custom_call.1} parent=1 // pred_fallthru
      _
    // Predicated region
    $region26: #{tpu_custom_call.1} parent=1 // pred_check
      _
    $region27: #{tpu_custom_call.1} parent=1 // pred_check_branch
      %106 = sbr.rel (0) target = $region29
    $region28: #{tpu_custom_call.1} parent=1 // pred_region
      %s108 = ssub.s32 16, 16
      %109 = vsyncadd [#allocation5], %s108
      %s111 = sshll.u32 [#allocation8], 4
      %s112 = int_to_ptr.vmem [resolvable:$true] %s111
      %114 = dma.vmem_to_hbm [thread:$0]  %s112, 16, %s2, [#allocation5]
    $region29: #{tpu_custom_call.1} parent=1 // pred_fallthru
      _
    // Predicated region
    $region30: #{tpu_custom_call.1} parent=1 // pred_check
      _
    $region31: #{tpu_custom_call.1} parent=1 // pred_check_branch
      %116 = sbr.rel (0) target = $region33
    $region32: #{tpu_custom_call.1} parent=1 // pred_region
      %117 = dma.done [#allocation5], 16
    $region33: #{tpu_custom_call.1} parent=1 // pred_fallthru
      _
    %118 = vsyncpa [#allocation4], 1
    %119 = vsyncpa [#allocation7], 1
    %120 = vsyncpa [#allocation5], 1

</llo_original>
